<compile_context>
chip_gen: v7x
topology: tpu7x:2x2x1
jax: 0.10.0
libtpu: 0.0.40
codegen_flags: <defaults>
</compile_context>

<pallas_src>
import jax
import jax.numpy as jnp
from jax.experimental import pallas as pl
from jax.experimental.pallas import tpu as pltpu


def critic_kernel(s_ref, a_ref, w1_ref, b1_ref, w2_ref, b2_ref, w3_ref, b3_ref,
                  o_ref):
    s = s_ref[...]                       # (state_dim, tb)
    a = a_ref[...]                       # (action_dim, tb)
    w1 = w1_ref[...]                     # (64, state_dim + action_dim) == l1.weight
    state_dim = s.shape[0]
    action_dim = a.shape[0]

    # ---- Layer 1 (4 -> 64) on the VPU: K is tiny, so 4 outer-product FMAs
    # beat a heavily zero-padded MXU pass.  Bias folded into the first FMA;
    # static Python loop -> fully unrolled.
    h1 = b1_ref[...] + w1[:, 0:1] * s[0:1, :]                      # (64, tb)
    for k in range(1, state_dim):
        h1 = h1 + w1[:, k:k + 1] * s[k:k + 1, :]
    for k in range(action_dim):
        c = state_dim + k
        h1 = h1 + w1[:, c:c + 1] * a[k:k + 1, :]
    h1 = jnp.maximum(h1, 0.0)                                      # (64, tb)

    # ---- Layer 2 (64 -> 32): the only layer worth the MXU.  N = tb, so the
    # MXU output is full lane-width (lane-dense result).
    h2 = jnp.dot(w2_ref[...], h1, preferred_element_type=jnp.float32)
    h2 = jnp.maximum(h2 + b2_ref[...], 0.0)                        # (32, tb)

    # ---- Layer 3 (32 -> 1): VPU multiply + sublane reduction; result is
    # already lane-dense (1, tb) -> unmasked full-lane store.
    q = jnp.sum(h2 * w3_ref[...], axis=0, keepdims=True) + b3_ref[...]
    o_ref[...] = q.astype(o_ref.dtype)                             # (1, tb)


def critic_forward(s, a, params, *, lane_tile=128, max_block_batch=4096):
    """s: (B, state_dim) f32, a: (B, action_dim) f32 -> (B, 1) f32."""
    w1, b1, w2, b2, w3, b3 = params
    B, state_dim = s.shape
    action_dim = a.shape[1]

    # Block-size choice: as few grid steps as possible (this kernel is
    # overhead-bound), but >= 2 steps once the batch is big enough so the
    # "parallel" axis can shard across v7x's two TensorCores.
    nblocks = 2 if B >= 2 * lane_tile else 1
    tb = -(-B // nblocks)                          # cdiv
    tb = min(tb, max_block_batch)
    tb = -(-tb // lane_tile) * lane_tile           # round up to a full lane tile
    b_pad = -(-B // tb) * tb                       # pad so every block is full
    grid = (b_pad // tb,)

    # Lane-dense (feature, batch) layout; zero-pad the batch axis.
    def to_lane_dense(x):
        xt = x.astype(jnp.float32).T               # (feat, B)
        if b_pad != B:
            xt = jnp.pad(xt, ((0, 0), (0, b_pad - B)))
        return xt

    s_t = to_lane_dense(s)                         # (state_dim, b_pad)
    a_t = to_lane_dense(a)                         # (action_dim, b_pad)

    def full_spec(shape):
        # Weights/biases: same (whole) block every grid step -> stay
        # VMEM-resident across the batch loop.
        return pl.BlockSpec(shape, lambda i: (0, 0))

    def batched_spec(feat):
        return pl.BlockSpec((feat, tb), lambda i: (0, i))

    q_t = pl.pallas_call(
        critic_kernel,
        out_shape=jax.ShapeDtypeStruct((1, b_pad), jnp.float32),
        grid=grid,
        in_specs=[
            batched_spec(state_dim),      # s  (state_dim, tb)
            batched_spec(action_dim),     # a  (action_dim, tb)
            full_spec(w1.shape),          # (64, 4)   == l1.weight
            full_spec(b1.shape),          # (64, 1)
            full_spec(w2.shape),          # (32, 64)  == l2.weight
            full_spec(b2.shape),          # (32, 1)
            full_spec(w3.shape),          # (32, 1)   == l3.weight.T
            full_spec(b3.shape),          # (1, 1)
        ],
        out_specs=batched_spec(1),        # (1, tb) lane-dense output
        compiler_params=pltpu.CompilerParams(
            dimension_semantics=("parallel",)),   # v7x: shard batch over 2 TCs
    )(s_t, a_t, w1, b1, w2, b2, w3, b3)

    return q_t[:, :B].T                            # (B, 1)


def init_params(key, state_dim, action_dim):
    """Deterministic synthetic init; shapes match the Critic's nn.Linear layers
    in their native PyTorch layouts (weight = (out, in), bias stored (out, 1))."""
    in_dim = state_dim + action_dim
    params = []
    for i, (fan_in, fan_out) in enumerate([(in_dim, 64), (64, 32)]):
        kw, kb, key = jax.random.split(jax.random.fold_in(key, i), 3)
        bound = 1.0 / jnp.sqrt(fan_in)
        w = jax.random.uniform(kw, (fan_out, fan_in), jnp.float32, -bound, bound)
        b = jax.random.uniform(kb, (fan_out, 1), jnp.float32, -bound, bound)
        params += [w, b]
    # l3: (32 -> 1); store weight transposed as (32, 1), bias (1, 1).
    kw, kb, key = jax.random.split(jax.random.fold_in(key, 2), 3)
    bound = 1.0 / jnp.sqrt(32)
    w3 = jax.random.uniform(kw, (32, 1), jnp.float32, -bound, bound)
    b3 = jax.random.uniform(kb, (1, 1), jnp.float32, -bound, bound)
    params += [w3, b3]
    return tuple(params)


def _reference(s, a, params):
    w1, b1, w2, b2, w3, b3 = params
    x = jnp.concatenate([s, a], axis=1)            # (B, 4)
    h = jnp.maximum(x @ w1.T + b1.T, 0.0)          # (B, 64)
    h = jnp.maximum(h @ w2.T + b2.T, 0.0)          # (B, 32)
    return h @ w3 + b3                             # (B, 1)


if __name__ == "__main__":
    state_dim = 3   # Pendulum-v1 observation dim
    action_dim = 1  # Pendulum-v1 action dim

    key = jax.random.PRNGKey(0)
    k_s, k_a, k_p = jax.random.split(key, 3)
    params = init_params(k_p, state_dim, action_dim)

    # Small batch: single block (grid=1), padded to one lane tile.
    batch = 8
    s = jax.random.normal(k_s, (batch, state_dim), jnp.float32)
    a = jax.random.normal(k_a, (batch, action_dim), jnp.float32)
    q = jax.block_until_ready(critic_forward(s, a, params))
    assert q.shape == (batch, 1)
    assert jnp.allclose(q, _reference(s, a, params), atol=1e-5, rtol=1e-5)

    # Larger, non-multiple-of-128 batch: exercises the 2-step parallel grid
    # and the wrapper-side padding.
    batch2 = 300
    s2 = jax.random.normal(jax.random.fold_in(k_s, 1), (batch2, state_dim), jnp.float32)
    a2 = jax.random.normal(jax.random.fold_in(k_a, 1), (batch2, action_dim), jnp.float32)
    q2 = jax.block_until_ready(critic_forward(s2, a2, params))
    assert q2.shape == (batch2, 1)
    assert jnp.allclose(q2, _reference(s2, a2, params), atol=1e-5, rtol=1e-5)

    print("KERNEL_OK")
</pallas_src>

<mosaic_0001>
module attributes {stable_mosaic.version = 11 : i64} {
  func.func @critic_kernel(%arg0: i32, %arg1: memref<3x128xf32, #tpu.memory_space<vmem>>, %arg2: memref<1x128xf32, #tpu.memory_space<vmem>>, %arg3: memref<64x4xf32, #tpu.memory_space<vmem>>, %arg4: memref<64x1xf32, #tpu.memory_space<vmem>>, %arg5: memref<32x64xf32, #tpu.memory_space<vmem>>, %arg6: memref<32x1xf32, #tpu.memory_space<vmem>>, %arg7: memref<32x1xf32, #tpu.memory_space<vmem>>, %arg8: memref<1x1xf32, #tpu.memory_space<vmem>>, %arg9: memref<1x128xf32, #tpu.memory_space<vmem>>) attributes {dimension_semantics = [#tpu.dimension_semantics<parallel>], iteration_bounds = array<i64: 1>, scalar_prefetch = 0 : i64, scratch_operands = 0 : i64, tpu.core_type = #tpu.core_type<tc>, window_params = [{transform_indices = @transform_0, window_bounds = array<i64: 3, 128>}, {transform_indices = @transform_1, window_bounds = array<i64: 1, 128>}, {pipeline_mode = #tpu.pipeline_mode<synchronous>, transform_indices = @transform_2, window_bounds = array<i64: 64, 4>}, {pipeline_mode = #tpu.pipeline_mode<synchronous>, transform_indices = @transform_3, window_bounds = array<i64: 64, 1>}, {pipeline_mode = #tpu.pipeline_mode<synchronous>, transform_indices = @transform_4, window_bounds = array<i64: 32, 64>}, {pipeline_mode = #tpu.pipeline_mode<synchronous>, transform_indices = @transform_5, window_bounds = array<i64: 32, 1>}, {pipeline_mode = #tpu.pipeline_mode<synchronous>, transform_indices = @transform_6, window_bounds = array<i64: 32, 1>}, {pipeline_mode = #tpu.pipeline_mode<synchronous>, transform_indices = @transform_7, window_bounds = array<i64: 1, 1>}, {transform_indices = @transform_8, window_bounds = array<i64: 1, 128>}]} {
    %c0 = arith.constant 0 : index
    %c0_0 = arith.constant 0 : index
    %0 = vector.load %arg1[%c0, %c0_0] : memref<3x128xf32, #tpu.memory_space<vmem>>, vector<3x128xf32>
    %c0_1 = arith.constant 0 : index
    %c0_2 = arith.constant 0 : index
    %1 = vector.load %arg2[%c0_1, %c0_2] : memref<1x128xf32, #tpu.memory_space<vmem>>, vector<1x128xf32>
    %c0_3 = arith.constant 0 : index
    %c0_4 = arith.constant 0 : index
    %2 = vector.load %arg3[%c0_3, %c0_4] : memref<64x4xf32, #tpu.memory_space<vmem>>, vector<64x4xf32>
    %c0_5 = arith.constant 0 : index
    %c0_6 = arith.constant 0 : index
    %3 = vector.load %arg4[%c0_5, %c0_6] : memref<64x1xf32, #tpu.memory_space<vmem>>, vector<64x1xf32>
    %4 = vector.extract_strided_slice %2 {offsets = [0, 0], sizes = [64, 1], strides = [1, 1]} : vector<64x4xf32> to vector<64x1xf32>
    %5 = vector.extract_strided_slice %0 {offsets = [0, 0], sizes = [1, 128], strides = [1, 1]} : vector<3x128xf32> to vector<1x128xf32>
    %6 = vector.broadcast %4 : vector<64x1xf32> to vector<64x128xf32>
    %7 = vector.broadcast %5 : vector<1x128xf32> to vector<64x128xf32>
    %8 = arith.mulf %6, %7 : vector<64x128xf32>
    %9 = vector.broadcast %3 : vector<64x1xf32> to vector<64x128xf32>
    %10 = arith.addf %9, %8 : vector<64x128xf32>
    %11 = vector.extract_strided_slice %2 {offsets = [0, 1], sizes = [64, 1], strides = [1, 1]} : vector<64x4xf32> to vector<64x1xf32>
    %12 = vector.extract_strided_slice %0 {offsets = [1, 0], sizes = [1, 128], strides = [1, 1]} : vector<3x128xf32> to vector<1x128xf32>
    %13 = vector.broadcast %11 : vector<64x1xf32> to vector<64x128xf32>
    %14 = vector.broadcast %12 : vector<1x128xf32> to vector<64x128xf32>
    %15 = arith.mulf %13, %14 : vector<64x128xf32>
    %16 = arith.addf %10, %15 : vector<64x128xf32>
    %17 = vector.extract_strided_slice %2 {offsets = [0, 2], sizes = [64, 1], strides = [1, 1]} : vector<64x4xf32> to vector<64x1xf32>
    %18 = vector.extract_strided_slice %0 {offsets = [2, 0], sizes = [1, 128], strides = [1, 1]} : vector<3x128xf32> to vector<1x128xf32>
    %19 = vector.broadcast %17 : vector<64x1xf32> to vector<64x128xf32>
    %20 = vector.broadcast %18 : vector<1x128xf32> to vector<64x128xf32>
    %21 = arith.mulf %19, %20 : vector<64x128xf32>
    %22 = arith.addf %16, %21 : vector<64x128xf32>
    %23 = vector.extract_strided_slice %2 {offsets = [0, 3], sizes = [64, 1], strides = [1, 1]} : vector<64x4xf32> to vector<64x1xf32>
    %24 = vector.broadcast %23 : vector<64x1xf32> to vector<64x128xf32>
    %25 = vector.broadcast %1 : vector<1x128xf32> to vector<64x128xf32>
    %26 = arith.mulf %24, %25 : vector<64x128xf32>
    %27 = arith.addf %22, %26 : vector<64x128xf32>
    %cst = arith.constant 0.000000e+00 : f32
    %28 = vector.broadcast %cst : f32 to vector<64x128xf32>
    %29 = arith.maximumf %27, %28 : vector<64x128xf32>
    %c0_7 = arith.constant 0 : index
    %c0_8 = arith.constant 0 : index
    %30 = vector.load %arg5[%c0_7, %c0_8] : memref<32x64xf32, #tpu.memory_space<vmem>>, vector<32x64xf32>
    %cst_9 = arith.constant dense<0.000000e+00> : vector<32x128xf32>
    %31 = tpu.matmul %30, %29, %cst_9 {dimension_numbers = #tpu.dot_dimension_numbers<[1], [0], [0], [1], [0, 0, 1, 1], [], []>} : vector<32x64xf32>, vector<64x128xf32>, vector<32x128xf32> -> vector<32x128xf32>
    %c0_10 = arith.constant 0 : index
    %c0_11 = arith.constant 0 : index
    %32 = vector.load %arg6[%c0_10, %c0_11] : memref<32x1xf32, #tpu.memory_space<vmem>>, vector<32x1xf32>
    %33 = vector.broadcast %32 : vector<32x1xf32> to vector<32x128xf32>
    %34 = arith.addf %31, %33 : vector<32x128xf32>
    %cst_12 = arith.constant 0.000000e+00 : f32
    %35 = vector.broadcast %cst_12 : f32 to vector<32x128xf32>
    %36 = arith.maximumf %34, %35 : vector<32x128xf32>
    %c0_13 = arith.constant 0 : index
    %c0_14 = arith.constant 0 : index
    %37 = vector.load %arg7[%c0_13, %c0_14] : memref<32x1xf32, #tpu.memory_space<vmem>>, vector<32x1xf32>
    %38 = vector.broadcast %37 : vector<32x1xf32> to vector<32x128xf32>
    %39 = arith.mulf %36, %38 : vector<32x128xf32>
    %cst_15 = arith.constant dense<0.000000e+00> : vector<128xf32>
    %40 = vector.multi_reduction <add>, %39, %cst_15 [0] : vector<32x128xf32> to vector<128xf32>
    %41 = vector.shape_cast %40 : vector<128xf32> to vector<1x128xf32>
    %c0_16 = arith.constant 0 : index
    %c0_17 = arith.constant 0 : index
    %42 = vector.load %arg8[%c0_16, %c0_17] : memref<1x1xf32, #tpu.memory_space<vmem>>, vector<1x1xf32>
    %43 = vector.broadcast %42 : vector<1x1xf32> to vector<1x128xf32>
    %44 = arith.addf %41, %43 : vector<1x128xf32>
    %c0_18 = arith.constant 0 : index
    %c0_19 = arith.constant 0 : index
    %45 = vector.load %arg9[%c0_18, %c0_19] : memref<1x128xf32, #tpu.memory_space<vmem>>, vector<1x128xf32>
    tpu.vector_store %arg9[%c0_18, %c0_19], %44 {strides = array<i32>} : memref<1x128xf32, #tpu.memory_space<vmem>>, vector<1x128xf32>,
    return
  }
  func.func @transform_0(%arg0: i32) -> (i32, i32) {
    %c0_i32 = arith.constant 0 : i32
    %c0_i32_0 = arith.constant 0 : i32
    return %c0_i32, %arg0 : i32, i32
  }
  func.func @transform_1(%arg0: i32) -> (i32, i32) {
    %c0_i32 = arith.constant 0 : i32
    %c0_i32_0 = arith.constant 0 : i32
    return %c0_i32, %arg0 : i32, i32
  }
  func.func @transform_2(%arg0: i32) -> (i32, i32) {
    %c0_i32 = arith.constant 0 : i32
    %c0_i32_0 = arith.constant 0 : i32
    %c0_i32_1 = arith.constant 0 : i32
    return %c0_i32, %c0_i32_0 : i32, i32
  }
  func.func @transform_3(%arg0: i32) -> (i32, i32) {
    %c0_i32 = arith.constant 0 : i32
    %c0_i32_0 = arith.constant 0 : i32
    %c0_i32_1 = arith.constant 0 : i32
    return %c0_i32, %c0_i32_0 : i32, i32
  }
  func.func @transform_4(%arg0: i32) -> (i32, i32) {
    %c0_i32 = arith.constant 0 : i32
    %c0_i32_0 = arith.constant 0 : i32
    %c0_i32_1 = arith.constant 0 : i32
    return %c0_i32, %c0_i32_0 : i32, i32
  }
  func.func @transform_5(%arg0: i32) -> (i32, i32) {
    %c0_i32 = arith.constant 0 : i32
    %c0_i32_0 = arith.constant 0 : i32
    %c0_i32_1 = arith.constant 0 : i32
    return %c0_i32, %c0_i32_0 : i32, i32
  }
  func.func @transform_6(%arg0: i32) -> (i32, i32) {
    %c0_i32 = arith.constant 0 : i32
    %c0_i32_0 = arith.constant 0 : i32
    %c0_i32_1 = arith.constant 0 : i32
    return %c0_i32, %c0_i32_0 : i32, i32
  }
  func.func @transform_7(%arg0: i32) -> (i32, i32) {
    %c0_i32 = arith.constant 0 : i32
    %c0_i32_0 = arith.constant 0 : i32
    %c0_i32_1 = arith.constant 0 : i32
    return %c0_i32, %c0_i32_0 : i32, i32
  }
  func.func @transform_8(%arg0: i32) -> (i32, i32) {
    %c0_i32 = arith.constant 0 : i32
    %c0_i32_0 = arith.constant 0 : i32
    return %c0_i32, %arg0 : i32, i32
  }
}

</mosaic_0001>

<llo_original>
// kernel: tpu_custom_call.1
$region0: #{tpu_custom_call.1}
  #allocation0 [shape = 'u32[]', space=smem, size = 0x4, offset = 0x4, fixed_abs, tag = 'smem constant byte address 0x4 - core index']
  #allocation1 [shape = 'u32[144,128]{1,0:T(1,128)}', space=vmem, size = 0x12000, scoped, tag = 'internal scratch']
  #allocation2 [shape = 'f32[1,1]{1,0:T(1,128)S(1)}', space=vmem, size = 0x200, scoped, tag = 'scoped memory for tpu_custom_call.1']
  %s0 = inlined_call_operand.vmem [shape: f32[3,128], index: 0, kind: input, shape index: {}]
  %s1 = inlined_call_operand.vmem [shape: f32[1,128], index: 1, kind: input, shape index: {}]
  %s2 = inlined_call_operand.vmem [shape: f32[64,4], index: 2, kind: input, shape index: {}]
  %s3 = inlined_call_operand.vmem [shape: f32[64,1], index: 3, kind: input, shape index: {}]
  %s4 = inlined_call_operand.vmem [shape: f32[32,64], index: 4, kind: input, shape index: {}]
  %s5 = inlined_call_operand.vmem [shape: f32[32,1], index: 5, kind: input, shape index: {}]
  %s6 = inlined_call_operand.vmem [shape: f32[32,1], index: 6, kind: input, shape index: {}]
  %s7 = inlined_call_operand.<no memory space> [shape: f32[1,1], index: 7, kind: input, shape index: {}]
  %s8 = inlined_call_operand.hbm [shape: f32[1,128], index: 8, kind: output, shape index: {}]
  %s9 = sld [smem:[#allocation0]]
  $region42: #{tpu_custom_call.1} parent=0
    _
  %s11 = ssub.s32 1, %s9
  %s12 = scalar_select 0, %s11, %s9
  %v13 = vstv %s7
  %14 = vst [vmem:[#allocation2] sm:$0x1] %v13
  $region1: #{tpu_custom_call.1} parent=0
    #allocation3 [shape = 'u8[512]{0}', space=vmem, size = 0x400, scoped, tag = 'output window, operand 0, single buffered']
    #allocation4 [shape = 's32[1]{0}', space=sflag, size = 0x4, scoped, tag = 'scoped memory for tpu_custom_call.1']
    %15 = vsyncpa [#allocation4], 0
    // Predicated region
    $region2: #{tpu_custom_call.1} parent=1 // pred_check
      _
    $region3: #{tpu_custom_call.1} parent=1 // pred_check_branch
      %17 = sbr.rel (0) target = $region5
    $region4: #{tpu_custom_call.1} parent=1 // pred_region
      _
    $region5: #{tpu_custom_call.1} parent=1 // pred_fallthru
      _
    // Predicated region
    $region6: #{tpu_custom_call.1} parent=1 // pred_check
      _
    $region7: #{tpu_custom_call.1} parent=1 // pred_check_branch
      %19 = sbr.rel (0) target = $region9
    $region8: #{tpu_custom_call.1} parent=1 // pred_region
      _
    $region9: #{tpu_custom_call.1} parent=1 // pred_fallthru
      _
    // Predicated region
    $region10: #{tpu_custom_call.1} parent=1 // pred_check
      _
    $region11: #{tpu_custom_call.1} parent=1 // pred_check_branch
      %21 = sbr.rel (0) target = $region13
    $region12: #{tpu_custom_call.1} parent=1 // pred_region
      _
    $region13: #{tpu_custom_call.1} parent=1 // pred_fallthru
      _
    // Predicated region
    $region14: #{tpu_custom_call.1} parent=1 // pred_check
      _
    $region15: #{tpu_custom_call.1} parent=1 // pred_check_branch
      %23 = sbr.rel (0) target = $region17
    $region16: #{tpu_custom_call.1} parent=1 // pred_region
      _
    $region17: #{tpu_custom_call.1} parent=1 // pred_fallthru
      _
    // Predicated region
    $region18: #{tpu_custom_call.1} parent=1 // pred_check
      _
    $region19: #{tpu_custom_call.1} parent=1 // pred_check_branch
      %25 = sbr.rel (0) target = $region21
    $region20: #{tpu_custom_call.1} parent=1 // pred_region
      _
    $region21: #{tpu_custom_call.1} parent=1 // pred_fallthru
      _
    // Predicated region
    $region22: #{tpu_custom_call.1} parent=1 // pred_check
      _
    $region23: #{tpu_custom_call.1} parent=1 // pred_check_branch
      %27 = sbr.rel (0) target = $region25
    $region24: #{tpu_custom_call.1} parent=1 // pred_region
      _
    $region25: #{tpu_custom_call.1} parent=1 // pred_fallthru
      _
    // Predicated region
    $region26: #{tpu_custom_call.1} parent=1 // pred_check
      _
    $region27: #{tpu_custom_call.1} parent=1 // pred_check_branch
      %29 = sbr.rel (0) target = $region29
    $region28: #{tpu_custom_call.1} parent=1 // pred_region
      _
    $region29: #{tpu_custom_call.1} parent=1 // pred_fallthru
      _
    // Predicated region
    $region30: #{tpu_custom_call.1} parent=1 // pred_check
      _
    $region31: #{tpu_custom_call.1} parent=1 // pred_check_branch
      %31 = sbr.rel (0) target = $region33
    $region32: #{tpu_custom_call.1} parent=1 // pred_region
      _
    $region33: #{tpu_custom_call.1} parent=1 // pred_fallthru
      _
    %v32 = vld [vmem:[%s0] sm:$0x7]
    %v33 = vld [vmem:[%s1] sm:$0x1]
    %v34 = vld [vmem:[%s2] sm:$0xff]
    %v35 = vld [vmem:[%s2 + $0x8] sm:$0xff]
    %v36 = vld [vmem:[%s2 + $0x10] sm:$0xff]
    %v37 = vld [vmem:[%s2 + $0x18] sm:$0xff]
    %v38 = vld [vmem:[%s2 + $0x20] sm:$0xff]
    %v39 = vld [vmem:[%s2 + $0x28] sm:$0xff]
    %v40 = vld [vmem:[%s2 + $0x30] sm:$0xff]
    %v41 = vld [vmem:[%s2 + $0x38] sm:$0xff]
    %v42 = vld [vmem:[%s3] sm:$0xff]
    %v43 = vld [vmem:[%s3 + $0x8] sm:$0xff]
    %v44 = vld [vmem:[%s3 + $0x10] sm:$0xff]
    %v45 = vld [vmem:[%s3 + $0x18] sm:$0xff]
    %v46 = vld [vmem:[%s3 + $0x20] sm:$0xff]
    %v47 = vld [vmem:[%s3 + $0x28] sm:$0xff]
    %v48 = vld [vmem:[%s3 + $0x30] sm:$0xff]
    %v49 = vld [vmem:[%s3 + $0x38] sm:$0xff]
    %51 = vset.pattern.permute.xlu0 0
    %52 = vperm.xlu0 %51, %v34
    %v53 = vpop.permute.xlu0 %52
    %56 = vset.pattern.permute.xlu0 0
    %57 = vperm.xlu0 %56, %v35
    %v58 = vpop.permute.xlu0 %57
    %61 = vset.pattern.permute.xlu0 0
    %62 = vperm.xlu0 %61, %v36
    %v63 = vpop.permute.xlu0 %62
    %66 = vset.pattern.permute.xlu0 0
    %67 = vperm.xlu0 %66, %v37
    %v68 = vpop.permute.xlu0 %67
    %71 = vset.pattern.permute.xlu0 0
    %72 = vperm.xlu0 %71, %v38
    %v73 = vpop.permute.xlu0 %72
    %76 = vset.pattern.permute.xlu0 0
    %77 = vperm.xlu0 %76, %v39
    %v78 = vpop.permute.xlu0 %77
    %81 = vset.pattern.permute.xlu0 0
    %82 = vperm.xlu0 %81, %v40
    %v83 = vpop.permute.xlu0 %82
    %86 = vset.pattern.permute.xlu0 0
    %87 = vperm.xlu0 %86, %v41
    %v88 = vpop.permute.xlu0 %87
    %v90 = vlaneseq
    %v91 = vshrl.u32 %v90, 7
    %v92 = vsub.s32 0, %v91
    %v93 = vrot.slane %v32, %v92
    %v94 = vmul.f32 %v53, %v93
    %v95 = vmul.f32 %v58, %v93
    %v96 = vmul.f32 %v63, %v93
    %v97 = vmul.f32 %v68, %v93
    %v98 = vmul.f32 %v73, %v93
    %v99 = vmul.f32 %v78, %v93
    %v100 = vmul.f32 %v83, %v93
    %v101 = vmul.f32 %v88, %v93
    %103 = vset.pattern.permute.xlu0 0
    %104 = vperm.xlu0 %103, %v42
    %v105 = vpop.permute.xlu0 %104
    %108 = vset.pattern.permute.xlu0 0
    %109 = vperm.xlu0 %108, %v43
    %v110 = vpop.permute.xlu0 %109
    %113 = vset.pattern.permute.xlu0 0
    %114 = vperm.xlu0 %113, %v44
    %v115 = vpop.permute.xlu0 %114
    %118 = vset.pattern.permute.xlu0 0
    %119 = vperm.xlu0 %118, %v45
    %v120 = vpop.permute.xlu0 %119
    %123 = vset.pattern.permute.xlu0 0
    %124 = vperm.xlu0 %123, %v46
    %v125 = vpop.permute.xlu0 %124
    %128 = vset.pattern.permute.xlu0 0
    %129 = vperm.xlu0 %128, %v47
    %v130 = vpop.permute.xlu0 %129
    %133 = vset.pattern.permute.xlu0 0
    %134 = vperm.xlu0 %133, %v48
    %v135 = vpop.permute.xlu0 %134
    %138 = vset.pattern.permute.xlu0 0
    %139 = vperm.xlu0 %138, %v49
    %v140 = vpop.permute.xlu0 %139
    %v142 = vadd.f32 %v105, %v94
    %v143 = vadd.f32 %v110, %v95
    %v144 = vadd.f32 %v115, %v96
    %v145 = vadd.f32 %v120, %v97
    %v146 = vadd.f32 %v125, %v98
    %v147 = vadd.f32 %v130, %v99
    %v148 = vadd.f32 %v135, %v100
    %v149 = vadd.f32 %v140, %v101
    %150 = vset.pattern.permute.xlu0 1
    %151 = vperm.xlu0 %150, %v34
    %v152 = vpop.permute.xlu0 %151
    %154 = vset.pattern.permute.xlu0 1
    %155 = vperm.xlu0 %154, %v35
    %v156 = vpop.permute.xlu0 %155
    %158 = vset.pattern.permute.xlu0 1
    %159 = vperm.xlu0 %158, %v36
    %v160 = vpop.permute.xlu0 %159
    %162 = vset.pattern.permute.xlu0 1
    %163 = vperm.xlu0 %162, %v37
    %v164 = vpop.permute.xlu0 %163
    %166 = vset.pattern.permute.xlu0 1
    %167 = vperm.xlu0 %166, %v38
    %v168 = vpop.permute.xlu0 %167
    %170 = vset.pattern.permute.xlu0 1
    %171 = vperm.xlu0 %170, %v39
    %v172 = vpop.permute.xlu0 %171
    %174 = vset.pattern.permute.xlu0 1
    %175 = vperm.xlu0 %174, %v40
    %v176 = vpop.permute.xlu0 %175
    %178 = vset.pattern.permute.xlu0 1
    %179 = vperm.xlu0 %178, %v41
    %v180 = vpop.permute.xlu0 %179
    %v182 = vlaneseq
    %v183 = vshrl.u32 %v182, 7
    %v184 = vsub.s32 1, %v183
    %v185 = vrot.slane %v32, %v184
    %v186 = vmul.f32 %v152, %v185
    %v187 = vmul.f32 %v156, %v185
    %v188 = vmul.f32 %v160, %v185
    %v189 = vmul.f32 %v164, %v185
    %v190 = vmul.f32 %v168, %v185
    %v191 = vmul.f32 %v172, %v185
    %v192 = vmul.f32 %v176, %v185
    %v193 = vmul.f32 %v180, %v185
    %v194 = vadd.f32 %v142, %v186
    %v195 = vadd.f32 %v143, %v187
    %v196 = vadd.f32 %v144, %v188
    %v197 = vadd.f32 %v145, %v189
    %v198 = vadd.f32 %v146, %v190
    %v199 = vadd.f32 %v147, %v191
    %v200 = vadd.f32 %v148, %v192
    %v201 = vadd.f32 %v149, %v193
    %202 = vset.pattern.permute.xlu0 2
    %203 = vperm.xlu0 %202, %v34
    %v204 = vpop.permute.xlu0 %203
    %206 = vset.pattern.permute.xlu0 2
    %207 = vperm.xlu0 %206, %v35
    %v208 = vpop.permute.xlu0 %207
    %210 = vset.pattern.permute.xlu0 2
    %211 = vperm.xlu0 %210, %v36
    %v212 = vpop.permute.xlu0 %211
    %214 = vset.pattern.permute.xlu0 2
    %215 = vperm.xlu0 %214, %v37
    %v216 = vpop.permute.xlu0 %215
    %218 = vset.pattern.permute.xlu0 2
    %219 = vperm.xlu0 %218, %v38
    %v220 = vpop.permute.xlu0 %219
    %222 = vset.pattern.permute.xlu0 2
    %223 = vperm.xlu0 %222, %v39
    %v224 = vpop.permute.xlu0 %223
    %226 = vset.pattern.permute.xlu0 2
    %227 = vperm.xlu0 %226, %v40
    %v228 = vpop.permute.xlu0 %227
    %230 = vset.pattern.permute.xlu0 2
    %231 = vperm.xlu0 %230, %v41
    %v232 = vpop.permute.xlu0 %231
    %v234 = vlaneseq
    %v235 = vshrl.u32 %v234, 7
    %v236 = vsub.s32 2, %v235
    %v237 = vrot.slane %v32, %v236
    %v238 = vmul.f32 %v204, %v237
    %v239 = vmul.f32 %v208, %v237
    %v240 = vmul.f32 %v212, %v237
    %v241 = vmul.f32 %v216, %v237
    %v242 = vmul.f32 %v220, %v237
    %v243 = vmul.f32 %v224, %v237
    %v244 = vmul.f32 %v228, %v237
    %v245 = vmul.f32 %v232, %v237
    %v246 = vadd.f32 %v194, %v238
    %v247 = vadd.f32 %v195, %v239
    %v248 = vadd.f32 %v196, %v240
    %v249 = vadd.f32 %v197, %v241
    %v250 = vadd.f32 %v198, %v242
    %v251 = vadd.f32 %v199, %v243
    %v252 = vadd.f32 %v200, %v244
    %v253 = vadd.f32 %v201, %v245
    %254 = vset.pattern.permute.xlu0 3
    %255 = vperm.xlu0 %254, %v34
    %v256 = vpop.permute.xlu0 %255
    %258 = vset.pattern.permute.xlu0 3
    %259 = vperm.xlu0 %258, %v35
    %v260 = vpop.permute.xlu0 %259
    %262 = vset.pattern.permute.xlu0 3
    %263 = vperm.xlu0 %262, %v36
    %v264 = vpop.permute.xlu0 %263
    %266 = vset.pattern.permute.xlu0 3
    %267 = vperm.xlu0 %266, %v37
    %v268 = vpop.permute.xlu0 %267
    %270 = vset.pattern.permute.xlu0 3
    %271 = vperm.xlu0 %270, %v38
    %v272 = vpop.permute.xlu0 %271
    %274 = vset.pattern.permute.xlu0 3
    %275 = vperm.xlu0 %274, %v39
    %v276 = vpop.permute.xlu0 %275
    %278 = vset.pattern.permute.xlu0 3
    %279 = vperm.xlu0 %278, %v40
    %v280 = vpop.permute.xlu0 %279
    %282 = vset.pattern.permute.xlu0 3
    %283 = vperm.xlu0 %282, %v41
    %v284 = vpop.permute.xlu0 %283
    %v287 = vlaneseq
    %v288 = vshrl.u32 %v287, 7
    %v289 = vsub.s32 0, %v288
    %v290 = vrot.slane %v33, %v289
    %v292 = vmul.f32 %v256, %v290
    %v293 = vmul.f32 %v260, %v290
    %v294 = vmul.f32 %v264, %v290
    %v295 = vmul.f32 %v268, %v290
    %v296 = vmul.f32 %v272, %v290
    %v297 = vmul.f32 %v276, %v290
    %v298 = vmul.f32 %v280, %v290
    %v299 = vmul.f32 %v284, %v290
    %v300 = vadd.f32 %v246, %v292
    %v301 = vadd.f32 %v247, %v293
    %v302 = vadd.f32 %v248, %v294
    %v303 = vadd.f32 %v249, %v295
    %v304 = vadd.f32 %v250, %v296
    %v305 = vadd.f32 %v251, %v297
    %v306 = vadd.f32 %v252, %v298
    %v307 = vadd.f32 %v253, %v299
    %v308 = vmax.f32 %v300, 0.0
    %v309 = vmax.f32 %v301, 0.0
    %v310 = vmax.f32 %v302, 0.0
    %v311 = vmax.f32 %v303, 0.0
    %v312 = vmax.f32 %v304, 0.0
    %v313 = vmax.f32 %v305, 0.0
    %v314 = vmax.f32 %v306, 0.0
    %v315 = vmax.f32 %v307, 0.0
    %v316 = vld [vmem:[%s4] sm:$0xff]
    %v317 = vld [vmem:[%s4 + $0x8] sm:$0xff]
    %v318 = vld [vmem:[%s4 + $0x10] sm:$0xff]
    %v319 = vld [vmem:[%s4 + $0x18] sm:$0xff]
    %v320 = vld [vmem:[%s5] sm:$0xff]
    %v321 = vld [vmem:[%s5 + $0x8] sm:$0xff]
    %v322 = vld [vmem:[%s5 + $0x10] sm:$0xff]
    %v323 = vld [vmem:[%s5 + $0x18] sm:$0xff]
    %325 = vset.pattern.permute.xlu0 0
    %326 = vperm.xlu0 %325, %v320
    %v327 = vpop.permute.xlu0 %326
    %330 = vset.pattern.permute.xlu0 0
    %331 = vperm.xlu0 %330, %v321
    %v332 = vpop.permute.xlu0 %331
    %335 = vset.pattern.permute.xlu0 0
    %336 = vperm.xlu0 %335, %v322
    %v337 = vpop.permute.xlu0 %336
    %340 = vset.pattern.permute.xlu0 0
    %341 = vperm.xlu0 %340, %v323
    %v342 = vpop.permute.xlu0 %341
    %vm344 = vcmask 523264
    %v346 = vsel %vm344, %v316, 0
    %v349 = vsel %vm344, %v317, 0
    %v352 = vsel %vm344, %v318, 0
    %v355 = vsel %vm344, %v319, 0
    %357 = vmatprep.subr.mxu0 0.0
    %358 = vmatpush1.msra.mxu0 %v308
    %359 = vmatprep.subr.mxu0 0.0
    %360 = vmatpush1.msra.mxu0 %v309
    %361 = vmatprep.subr.mxu0 0.0
    %362 = vmatpush1.msra.mxu0 %v310
    %363 = vmatprep.subr.mxu0 0.0
    %364 = vmatpush1.msra.mxu0 %v311
    %365 = vmatprep.subr.mxu0 0.0
    %366 = vmatpush1.msra.mxu0 %v312
    %367 = vmatprep.subr.mxu0 0.0
    %368 = vmatpush1.msra.mxu0 %v313
    %369 = vmatprep.subr.mxu0 0.0
    %370 = vmatpush1.msra.mxu0 %v314
    %371 = vmatprep.subr.mxu0 0.0
    %372 = vmatpush1.msra.mxu0 %v315
    %373 = vmatprep.subr.mxu0 0.0
    %374 = vmatpush1.msra.mxu0 0.0
    %375 = vmatprep.subr.mxu0 0.0
    %376 = vmatpush1.msra.mxu0 0.0
    %377 = vmatprep.subr.mxu0 0.0
    %378 = vmatpush1.msra.mxu0 0.0
    %379 = vmatprep.subr.mxu0 0.0
    %380 = vmatpush1.msra.mxu0 0.0
    %381 = vmatprep.subr.mxu0 0.0
    %382 = vmatpush1.msra.mxu0 0.0
    %383 = vmatprep.subr.mxu0 0.0
    %384 = vmatpush1.msra.mxu0 0.0
    %385 = vmatprep.subr.mxu0 0.0
    %386 = vmatpush1.msra.mxu0 0.0
    %387 = vmatprep.subr.mxu0 0.0
    %388 = vmatpush1.msra.mxu0 0.0
    %389 = vmatprep.subr.mxu0 0.0
    %390 = vmatpush1.msra.mxu0 0.0
    %391 = vmatprep.subr.mxu0 0.0
    %392 = vmatpush1.msra.mxu0 0.0
    %393 = vmatprep.subr.mxu0 0.0
    %394 = vmatpush1.msra.mxu0 0.0
    %395 = vmatprep.subr.mxu0 0.0
    %396 = vmatpush1.msra.mxu0 0.0
    %397 = vmatprep.subr.mxu0 0.0
    %398 = vmatpush1.msra.mxu0 0.0
    %399 = vmatprep.subr.mxu0 0.0
    %400 = vmatpush1.msra.mxu0 0.0
    %401 = vmatprep.subr.mxu0 0.0
    %402 = vmatpush1.msra.mxu0 0.0
    %403 = vmatprep.subr.mxu0 0.0
    %404 = vmatpush1.msra.mxu0 0.0
    %405 = vmatprep.subr.mxu0 0.0
    %406 = vmatpush1.msra.mxu0 0.0
    %407 = vmatprep.subr.mxu0 0.0
    %408 = vmatpush1.msra.mxu0 0.0
    %409 = vmatprep.subr.mxu0 0.0
    %410 = vmatpush1.msra.mxu0 0.0
    %411 = vmatprep.subr.mxu0 0.0
    %412 = vmatpush1.msra.mxu0 0.0
    %413 = vmatprep.subr.mxu0 0.0
    %414 = vmatpush1.msra.mxu0 0.0
    %415 = vmatprep.subr.mxu0 0.0
    %416 = vmatpush1.msra.mxu0 0.0
    %417 = vmatprep.subr.mxu0 0.0
    %418 = vmatpush1.msra.mxu0 0.0
    %419 = vmatprep.subr.mxu0 0.0
    %420 = vmatpush1.msra.mxu0 0.0
    %421 = vmatprep.mubr.f32.mxu0 0.0
    %422 = vmatmul.mubr.f32.gmra.mrb[0].mxu0 %v346
    %v423 = vpop.f32.mrb[0].mxu0
    %v424 = vadd.f32 %v327, %v423
    %v425 = vpop.f32.mrb[0].mxu0
    %426 = vmatprep.mubr.f32.mxu0 0.0
    %427 = vmatmul.mubr.f32.gmra.mrb[0].mxu0 %v349
    %v428 = vpop.f32.mrb[0].mxu0
    %v429 = vadd.f32 %v332, %v428
    %v430 = vpop.f32.mrb[0].mxu0
    %431 = vmatprep.mubr.f32.mxu0 0.0
    %432 = vmatmul.mubr.f32.gmra.mrb[0].mxu0 %v352
    %v433 = vpop.f32.mrb[0].mxu0
    %v434 = vadd.f32 %v337, %v433
    %v435 = vpop.f32.mrb[0].mxu0
    %436 = vmatprep.mubr.f32.mxu0 0.0
    %437 = vmatmul.mubr.f32.gmra.mrb[0].mxu0 %v355
    %v438 = vpop.f32.mrb[0].mxu0
    %v439 = vadd.f32 %v342, %v438
    %v440 = vpop.f32.mrb[0].mxu0
    %441 = vdwg.mxu0
    %v442 = vmax.f32 %v424, 0.0
    %v443 = vmax.f32 %v429, 0.0
    %v444 = vmax.f32 %v434, 0.0
    %v445 = vmax.f32 %v439, 0.0
    %v446 = vld [vmem:[%s6] sm:$0xff]
    %v447 = vld [vmem:[%s6 + $0x8] sm:$0xff]
    %v448 = vld [vmem:[%s6 + $0x10] sm:$0xff]
    %v449 = vld [vmem:[%s6 + $0x18] sm:$0xff]
    %451 = vset.pattern.permute.xlu0 0
    %452 = vperm.xlu0 %451, %v446
    %v453 = vpop.permute.xlu0 %452
    %456 = vset.pattern.permute.xlu0 0
    %457 = vperm.xlu0 %456, %v447
    %v458 = vpop.permute.xlu0 %457
    %461 = vset.pattern.permute.xlu0 0
    %462 = vperm.xlu0 %461, %v448
    %v463 = vpop.permute.xlu0 %462
    %466 = vset.pattern.permute.xlu0 0
    %467 = vperm.xlu0 %466, %v449
    %v468 = vpop.permute.xlu0 %467
    %v470 = vmul.f32 %v442, %v453
    %v471 = vmul.f32 %v443, %v458
    %v472 = vmul.f32 %v444, %v463
    %v473 = vmul.f32 %v445, %v468
    %v474 = vadd.f32 %v470, %v471
    %v475 = vadd.f32 %v474, %v472
    %v476 = vadd.f32 %v475, %v473
    %v477 = vrot.slane %v476, 4
    %v478 = vadd.f32 %v476, %v477
    %v479 = vrot.slane %v478, 2
    %v480 = vadd.f32 %v478, %v479
    %v481 = vrot.slane %v480, 1
    %v482 = vadd.f32 %v480, %v481
    %v483 = vld [vmem:[#allocation2] sm:$0x1]
    %485 = vset.pattern.permute.xlu0 0
    %486 = vperm.xlu0 %485, %v483
    %v487 = vpop.permute.xlu0 %486
    %v489 = vlaneseq
    %v490 = vshrl.u32 %v489, 7
    %v491 = vsub.s32 0, %v490
    %v492 = vrot.slane %v487, %v491
    %v493 = vadd.f32 %v482, %v492
    %494 = vst [vmem:[#allocation3] sm:$0x1] %v493
    // Predicated region
    $region34: #{tpu_custom_call.1} parent=1 // pred_check
      _
    $region35: #{tpu_custom_call.1} parent=1 // pred_check_branch
      %496 = sbr.rel (0) target = $region37
    $region36: #{tpu_custom_call.1} parent=1 // pred_region
      %s498 = ssub.s32 16, 16
      %499 = vsyncadd [#allocation4], %s498
      %s501 = sshll.u32 [#allocation3], 4
      %s502 = int_to_ptr.vmem [resolvable:$true] %s501
      %504 = dma.vmem_to_hbm [thread:$0]  %s502, 16, %s8, [#allocation4]
    $region37: #{tpu_custom_call.1} parent=1 // pred_fallthru
      _
    // Predicated region
    $region38: #{tpu_custom_call.1} parent=1 // pred_check
      _
    $region39: #{tpu_custom_call.1} parent=1 // pred_check_branch
      %506 = sbr.rel (0) target = $region41
    $region40: #{tpu_custom_call.1} parent=1 // pred_region
      %507 = dma.done [#allocation4], 16
    $region41: #{tpu_custom_call.1} parent=1 // pred_fallthru
      _
    %508 = vsyncpa [#allocation4], 1

</llo_original>
